<compile_context>
chip_gen: v7x
topology: tpu7x:2x2x1
jax: 0.10.0
libtpu: 0.0.40
codegen_flags: <defaults>
</compile_context>

<pallas_src>
import functools

import jax
import jax.numpy as jnp
from jax.experimental import pallas as pl
from jax.experimental.pallas import tpu as pltpu

# dropout rates are module-level globals in the original script
DROPOUT1 = 0.2
DROPOUT2 = 0.5

# integer keep-thresholds: keep element iff uniform_bits >= round(p * 2^32)
# (valid for 0 <= p < 1, which covers 0.2 / 0.5)
_THRESH1 = int(round(DROPOUT1 * (2 ** 32)))
_THRESH2 = int(round(DROPOUT2 * (2 ** 32)))
_SCALE1 = 1.0 / (1.0 - DROPOUT1)
_SCALE2 = 1.0 / (1.0 - DROPOUT2)

_LANES = 128


def _round_up(n, m):
    return ((n + m - 1) // m) * m


def _pad2d(a, rows, cols):
    r, c = a.shape
    return jnp.pad(a, ((0, rows - r), (0, cols - c)))


def mlp_dropout_kernel(x_ref, w1_ref, b1_ref, w2_ref, b2_ref, w3_ref, b3_ref,
                       bits1_ref, bits2_ref, o_ref):
    # layer 1: linear (bf16 MXU operands, f32 accumulate) + relu + dropout(p1)
    h1 = jnp.dot(x_ref[...], w1_ref[...],
                 preferred_element_type=jnp.float32) + b1_ref[...]
    h1 = jnp.maximum(h1, 0.0)
    keep1 = (bits1_ref[...] >= jnp.uint32(_THRESH1)).astype(jnp.float32)
    h1 = h1 * (keep1 * jnp.float32(_SCALE1))

    # layer 2: linear + relu + dropout(p2)
    h2 = jnp.dot(h1.astype(jnp.bfloat16), w2_ref[...],
                 preferred_element_type=jnp.float32) + b2_ref[...]
    h2 = jnp.maximum(h2, 0.0)
    keep2 = (bits2_ref[...] >= jnp.uint32(_THRESH2)).astype(jnp.float32)
    h2 = h2 * (keep2 * jnp.float32(_SCALE2))

    # layer 3: linear (no activation); lane-dense (padded-to-128) store
    o_ref[...] = jnp.dot(h2.astype(jnp.bfloat16), w3_ref[...],
                         preferred_element_type=jnp.float32) + b3_ref[...]


@functools.partial(jax.jit, static_argnames=("tile_b",))
def net_forward(x, params, key, tile_b=512):
    """Pallas-backed forward of Net (training=True)."""
    w1, b1, w2, b2, w3, b3 = params
    num_inputs = w1.shape[0]
    h1_dim, h2_dim = w1.shape[1], w2.shape[1]
    num_outputs = w3.shape[1]

    # flatten exactly like `x.reshape((-1, self.num_inputs))`
    x2d = x.reshape((-1, num_inputs)).astype(jnp.float32)
    B = x2d.shape[0]

    # --- lane-pad hidden/output widths to multiples of 128 -----------------
    H1P = _round_up(h1_dim, _LANES)
    H2P = _round_up(h2_dim, _LANES)
    OUTP = _round_up(num_outputs, _LANES)

    w1p = _pad2d(w1, num_inputs, H1P).astype(jnp.bfloat16)
    b1p = _pad2d(b1, 1, H1P).astype(jnp.float32)
    w2p = _pad2d(w2, H1P, H2P).astype(jnp.bfloat16)
    b2p = _pad2d(b2, 1, H2P).astype(jnp.float32)
    w3p = _pad2d(w3, H2P, OUTP).astype(jnp.bfloat16)
    b3p = _pad2d(b3, 1, OUTP).astype(jnp.float32)

    # --- batch tiling (TB multiple of 8, sized well within v7x VMEM) -------
    TB = min(tile_b, _round_up(B, 8))
    B_pad = _round_up(B, TB)
    x_p = _pad2d(x2d, B_pad, num_inputs).astype(jnp.bfloat16)

    # host-generated uniform uint32 bits, one per (padded) hidden activation;
    # per-tile blocks keep dropout masks independent across grid steps.
    kb1, kb2 = jax.random.split(key)
    bits1 = jax.random.bits(kb1, (B_pad, H1P), jnp.uint32)
    bits2 = jax.random.bits(kb2, (B_pad, H2P), jnp.uint32)

    grid = (pl.cdiv(B_pad, TB),)

    tile_spec = lambda shape: pl.BlockSpec(shape, lambda i: (i, 0))
    resident = lambda shape: pl.BlockSpec(shape, lambda i: (0, 0))

    flops = 2 * B_pad * (num_inputs * H1P + H1P * H2P + H2P * OUTP)
    bytes_accessed = (x_p.size * 2
                      + w1p.size * 2 + w2p.size * 2 + w3p.size * 2
                      + b1p.size * 4 + b2p.size * 4 + b3p.size * 4
                      + bits1.size * 4 + bits2.size * 4
                      + B_pad * OUTP * 4)

    out_padded = pl.pallas_call(
        mlp_dropout_kernel,
        out_shape=jax.ShapeDtypeStruct((B_pad, OUTP), jnp.float32),
        grid=grid,
        in_specs=[
            tile_spec((TB, num_inputs)),        # x
            resident((num_inputs, H1P)),        # w1
            resident((1, H1P)),                 # b1
            resident((H1P, H2P)),               # w2
            resident((1, H2P)),                 # b2
            resident((H2P, OUTP)),              # w3
            resident((1, OUTP)),                # b3
            tile_spec((TB, H1P)),               # dropout bits, layer 1
            tile_spec((TB, H2P)),               # dropout bits, layer 2
        ],
        out_specs=tile_spec((TB, OUTP)),
        compiler_params=pltpu.CompilerParams(
            dimension_semantics=("parallel",)),
        cost_estimate=pl.CostEstimate(
            flops=flops, transcendentals=0, bytes_accessed=bytes_accessed),
    )(x_p, w1p, b1p, w2p, b2p, w3p, b3p, bits1, bits2)

    # strip batch padding and the lane padding of the output
    return out_padded[:B, :num_outputs]


def init_params(key, num_inputs, num_outputs, num_hiddens1, num_hiddens2):
    """Deterministic synthetic parameters (weights stored as (in, out))."""
    k1, k2, k3 = jax.random.split(key, 3)
    w1 = jax.random.normal(k1, (num_inputs, num_hiddens1), jnp.float32) * 0.1
    b1 = jnp.zeros((1, num_hiddens1), jnp.float32)
    w2 = jax.random.normal(k2, (num_hiddens1, num_hiddens2), jnp.float32) * 0.1
    b2 = jnp.zeros((1, num_hiddens2), jnp.float32)
    w3 = jax.random.normal(k3, (num_hiddens2, num_outputs), jnp.float32) * 0.1
    b3 = jnp.zeros((1, num_outputs), jnp.float32)
    return (w1, b1, w2, b2, w3, b3)


if __name__ == "__main__":
    # small shapes consistent with the module:
    #   x: (B=8, C=1, H=8, W=8)  ->  num_inputs = 64
    num_inputs, num_outputs = 64, 16
    num_hiddens1, num_hiddens2 = 32, 32
    B = 8

    key = jax.random.PRNGKey(0)
    kx, kp, kd = jax.random.split(key, 3)
    x = jax.random.normal(kx, (B, 1, 8, 8), jnp.float32)
    params = init_params(kp, num_inputs, num_outputs, num_hiddens1, num_hiddens2)

    out = net_forward(x, params, kd)
    jax.block_until_ready(out)

    assert out.shape == (B, num_outputs), out.shape
    assert bool(jnp.all(jnp.isfinite(out)))
    print("KERNEL_OK")
</pallas_src>

<mosaic_0001>
module attributes {stable_mosaic.version = 11 : i64} {
  func.func @mlp_dropout_kernel(%arg0: i32, %arg1: memref<8x64xbf16, #tpu.memory_space<vmem>>, %arg2: memref<64x128xbf16, #tpu.memory_space<vmem>>, %arg3: memref<1x128xf32, #tpu.memory_space<vmem>>, %arg4: memref<128x128xbf16, #tpu.memory_space<vmem>>, %arg5: memref<1x128xf32, #tpu.memory_space<vmem>>, %arg6: memref<128x128xbf16, #tpu.memory_space<vmem>>, %arg7: memref<1x128xf32, #tpu.memory_space<vmem>>, %arg8: memref<8x128xi32, #tpu.memory_space<vmem>>, %arg9: memref<8x128xi32, #tpu.memory_space<vmem>>, %arg10: memref<8x128xf32, #tpu.memory_space<vmem>>) attributes {dimension_semantics = [#tpu.dimension_semantics<parallel>], iteration_bounds = array<i64: 1>, scalar_prefetch = 0 : i64, scratch_operands = 0 : i64, tpu.core_type = #tpu.core_type<tc>, window_params = [{transform_indices = @transform_0, window_bounds = array<i64: 8, 64>}, {pipeline_mode = #tpu.pipeline_mode<synchronous>, transform_indices = @transform_1, window_bounds = array<i64: 64, 128>}, {pipeline_mode = #tpu.pipeline_mode<synchronous>, transform_indices = @transform_2, window_bounds = array<i64: 1, 128>}, {pipeline_mode = #tpu.pipeline_mode<synchronous>, transform_indices = @transform_3, window_bounds = array<i64: 128, 128>}, {pipeline_mode = #tpu.pipeline_mode<synchronous>, transform_indices = @transform_4, window_bounds = array<i64: 1, 128>}, {pipeline_mode = #tpu.pipeline_mode<synchronous>, transform_indices = @transform_5, window_bounds = array<i64: 128, 128>}, {pipeline_mode = #tpu.pipeline_mode<synchronous>, transform_indices = @transform_6, window_bounds = array<i64: 1, 128>}, {transform_indices = @transform_7, window_bounds = array<i64: 8, 128>}, {transform_indices = @transform_8, window_bounds = array<i64: 8, 128>}, {transform_indices = @transform_9, window_bounds = array<i64: 8, 128>}]} {
    %c0 = arith.constant 0 : index
    %c0_0 = arith.constant 0 : index
    %0 = vector.load %arg1[%c0, %c0_0] : memref<8x64xbf16, #tpu.memory_space<vmem>>, vector<8x64xbf16>
    %c0_1 = arith.constant 0 : index
    %c0_2 = arith.constant 0 : index
    %1 = vector.load %arg2[%c0_1, %c0_2] : memref<64x128xbf16, #tpu.memory_space<vmem>>, vector<64x128xbf16>
    %cst = arith.constant dense<0.000000e+00> : vector<8x128xf32>
    %2 = tpu.matmul %0, %1, %cst {dimension_numbers = #tpu.dot_dimension_numbers<[1], [0], [0], [1], [0, 0, 1, 1], [], []>} : vector<8x64xbf16>, vector<64x128xbf16>, vector<8x128xf32> -> vector<8x128xf32>
    %c0_3 = arith.constant 0 : index
    %c0_4 = arith.constant 0 : index
    %3 = vector.load %arg3[%c0_3, %c0_4] : memref<1x128xf32, #tpu.memory_space<vmem>>, vector<1x128xf32>
    %4 = vector.broadcast %3 : vector<1x128xf32> to vector<8x128xf32>
    %5 = arith.addf %2, %4 : vector<8x128xf32>
    %cst_5 = arith.constant 0.000000e+00 : f32
    %6 = vector.broadcast %cst_5 : f32 to vector<8x128xf32>
    %7 = arith.maximumf %5, %6 : vector<8x128xf32>
    %c0_6 = arith.constant 0 : index
    %c0_7 = arith.constant 0 : index
    %8 = vector.load %arg8[%c0_6, %c0_7] : memref<8x128xi32, #tpu.memory_space<vmem>>, vector<8x128xi32>
    %c858993459_i32 = arith.constant 858993459 : i32
    %9 = vector.broadcast %c858993459_i32 : i32 to vector<8x128xi32>
    %10 = arith.cmpi uge, %8, %9 : vector<8x128xi32>
    %11 = arith.extui %10 : vector<8x128xi1> to vector<8x128xi32>
    %12 = arith.sitofp %11 : vector<8x128xi32> to vector<8x128xf32>
    %cst_8 = arith.constant 1.250000e+00 : f32
    %13 = vector.broadcast %cst_8 : f32 to vector<8x128xf32>
    %14 = arith.mulf %12, %13 : vector<8x128xf32>
    %15 = arith.mulf %7, %14 : vector<8x128xf32>
    %16 = arith.truncf %15 : vector<8x128xf32> to vector<8x128xbf16>
    %c0_9 = arith.constant 0 : index
    %c0_10 = arith.constant 0 : index
    %17 = vector.load %arg4[%c0_9, %c0_10] : memref<128x128xbf16, #tpu.memory_space<vmem>>, vector<128x128xbf16>
    %cst_11 = arith.constant dense<0.000000e+00> : vector<8x128xf32>
    %18 = tpu.matmul %16, %17, %cst_11 {dimension_numbers = #tpu.dot_dimension_numbers<[1], [0], [0], [1], [0, 0, 1, 1], [], []>} : vector<8x128xbf16>, vector<128x128xbf16>, vector<8x128xf32> -> vector<8x128xf32>
    %c0_12 = arith.constant 0 : index
    %c0_13 = arith.constant 0 : index
    %19 = vector.load %arg5[%c0_12, %c0_13] : memref<1x128xf32, #tpu.memory_space<vmem>>, vector<1x128xf32>
    %20 = vector.broadcast %19 : vector<1x128xf32> to vector<8x128xf32>
    %21 = arith.addf %18, %20 : vector<8x128xf32>
    %cst_14 = arith.constant 0.000000e+00 : f32
    %22 = vector.broadcast %cst_14 : f32 to vector<8x128xf32>
    %23 = arith.maximumf %21, %22 : vector<8x128xf32>
    %c0_15 = arith.constant 0 : index
    %c0_16 = arith.constant 0 : index
    %24 = vector.load %arg9[%c0_15, %c0_16] : memref<8x128xi32, #tpu.memory_space<vmem>>, vector<8x128xi32>
    %c-2147483648_i32 = arith.constant -2147483648 : i32
    %25 = vector.broadcast %c-2147483648_i32 : i32 to vector<8x128xi32>
    %26 = arith.cmpi uge, %24, %25 : vector<8x128xi32>
    %27 = arith.extui %26 : vector<8x128xi1> to vector<8x128xi32>
    %28 = arith.sitofp %27 : vector<8x128xi32> to vector<8x128xf32>
    %cst_17 = arith.constant 2.000000e+00 : f32
    %29 = vector.broadcast %cst_17 : f32 to vector<8x128xf32>
    %30 = arith.mulf %28, %29 : vector<8x128xf32>
    %31 = arith.mulf %23, %30 : vector<8x128xf32>
    %32 = arith.truncf %31 : vector<8x128xf32> to vector<8x128xbf16>
    %c0_18 = arith.constant 0 : index
    %c0_19 = arith.constant 0 : index
    %33 = vector.load %arg6[%c0_18, %c0_19] : memref<128x128xbf16, #tpu.memory_space<vmem>>, vector<128x128xbf16>
    %cst_20 = arith.constant dense<0.000000e+00> : vector<8x128xf32>
    %34 = tpu.matmul %32, %33, %cst_20 {dimension_numbers = #tpu.dot_dimension_numbers<[1], [0], [0], [1], [0, 0, 1, 1], [], []>} : vector<8x128xbf16>, vector<128x128xbf16>, vector<8x128xf32> -> vector<8x128xf32>
    %c0_21 = arith.constant 0 : index
    %c0_22 = arith.constant 0 : index
    %35 = vector.load %arg7[%c0_21, %c0_22] : memref<1x128xf32, #tpu.memory_space<vmem>>, vector<1x128xf32>
    %36 = vector.broadcast %35 : vector<1x128xf32> to vector<8x128xf32>
    %37 = arith.addf %34, %36 : vector<8x128xf32>
    %c0_23 = arith.constant 0 : index
    %c0_24 = arith.constant 0 : index
    %38 = vector.load %arg10[%c0_23, %c0_24] : memref<8x128xf32, #tpu.memory_space<vmem>>, vector<8x128xf32>
    tpu.vector_store %arg10[%c0_23, %c0_24], %37 {strides = array<i32>} : memref<8x128xf32, #tpu.memory_space<vmem>>, vector<8x128xf32>,
    return
  }
  func.func @transform_0(%arg0: i32) -> (i32, i32) {
    %c0_i32 = arith.constant 0 : i32
    %c0_i32_0 = arith.constant 0 : i32
    return %arg0, %c0_i32 : i32, i32
  }
  func.func @transform_1(%arg0: i32) -> (i32, i32) {
    %c0_i32 = arith.constant 0 : i32
    %c0_i32_0 = arith.constant 0 : i32
    %c0_i32_1 = arith.constant 0 : i32
    return %c0_i32, %c0_i32_0 : i32, i32
  }
  func.func @transform_2(%arg0: i32) -> (i32, i32) {
    %c0_i32 = arith.constant 0 : i32
    %c0_i32_0 = arith.constant 0 : i32
    %c0_i32_1 = arith.constant 0 : i32
    return %c0_i32, %c0_i32_0 : i32, i32
  }
  func.func @transform_3(%arg0: i32) -> (i32, i32) {
    %c0_i32 = arith.constant 0 : i32
    %c0_i32_0 = arith.constant 0 : i32
    %c0_i32_1 = arith.constant 0 : i32
    return %c0_i32, %c0_i32_0 : i32, i32
  }
  func.func @transform_4(%arg0: i32) -> (i32, i32) {
    %c0_i32 = arith.constant 0 : i32
    %c0_i32_0 = arith.constant 0 : i32
    %c0_i32_1 = arith.constant 0 : i32
    return %c0_i32, %c0_i32_0 : i32, i32
  }
  func.func @transform_5(%arg0: i32) -> (i32, i32) {
    %c0_i32 = arith.constant 0 : i32
    %c0_i32_0 = arith.constant 0 : i32
    %c0_i32_1 = arith.constant 0 : i32
    return %c0_i32, %c0_i32_0 : i32, i32
  }
  func.func @transform_6(%arg0: i32) -> (i32, i32) {
    %c0_i32 = arith.constant 0 : i32
    %c0_i32_0 = arith.constant 0 : i32
    %c0_i32_1 = arith.constant 0 : i32
    return %c0_i32, %c0_i32_0 : i32, i32
  }
  func.func @transform_7(%arg0: i32) -> (i32, i32) {
    %c0_i32 = arith.constant 0 : i32
    %c0_i32_0 = arith.constant 0 : i32
    return %arg0, %c0_i32 : i32, i32
  }
  func.func @transform_8(%arg0: i32) -> (i32, i32) {
    %c0_i32 = arith.constant 0 : i32
    %c0_i32_0 = arith.constant 0 : i32
    return %arg0, %c0_i32 : i32, i32
  }
  func.func @transform_9(%arg0: i32) -> (i32, i32) {
    %c0_i32 = arith.constant 0 : i32
    %c0_i32_0 = arith.constant 0 : i32
    return %arg0, %c0_i32 : i32, i32
  }
}

</mosaic_0001>

<llo_original>
// kernel: net_forward.7
$region0: #{net_forward.7}
  #allocation0 [shape = 'u32[]', space=smem, size = 0x4, offset = 0x4, fixed_abs, tag = 'smem constant byte address 0x4 - core index']
  #allocation1 [shape = 'u32[144,128]{1,0:T(1,128)}', space=vmem, size = 0x12000, scoped, tag = 'internal scratch']
  %s0 = inlined_call_operand.vmem [shape: bf16[8,64], index: 0, kind: input, shape index: {}]
  %s1 = inlined_call_operand.vmem [shape: bf16[64,128], index: 1, kind: input, shape index: {}]
  %s2 = inlined_call_operand.vmem [shape: f32[1,128], index: 2, kind: input, shape index: {}]
  %s3 = inlined_call_operand.vmem [shape: bf16[128,128], index: 3, kind: input, shape index: {}]
  %s4 = inlined_call_operand.vmem [shape: f32[1,128], index: 4, kind: input, shape index: {}]
  %s5 = inlined_call_operand.vmem [shape: bf16[128,128], index: 5, kind: input, shape index: {}]
  %s6 = inlined_call_operand.vmem [shape: f32[1,128], index: 6, kind: input, shape index: {}]
  %s7 = inlined_call_operand.vmem [shape: u32[8,128], index: 7, kind: input, shape index: {}]
  %s8 = inlined_call_operand.vmem [shape: u32[8,128], index: 8, kind: input, shape index: {}]
  %s9 = inlined_call_operand.hbm [shape: f32[8,128], index: 9, kind: output, shape index: {}]
  %s10 = sld [smem:[#allocation0]]
  $region46: #{net_forward.7} parent=0
    _
  %s12 = ssub.s32 1, %s10
  %s13 = scalar_select 0, %s12, %s10
  $region1: #{net_forward.7} parent=0
    #allocation2 [shape = 'u8[4096]{0}', space=vmem, size = 0x1000, scoped, tag = 'output window, operand 0, single buffered']
    #allocation3 [shape = 's32[1]{0}', space=sflag, size = 0x4, scoped, tag = 'scoped memory for net_forward.7']
    %14 = vsyncpa [#allocation3], 0
    // Predicated region
    $region2: #{net_forward.7} parent=1 // pred_check
      _
    $region3: #{net_forward.7} parent=1 // pred_check_branch
      %16 = sbr.rel (0) target = $region5
    $region4: #{net_forward.7} parent=1 // pred_region
      _
    $region5: #{net_forward.7} parent=1 // pred_fallthru
      _
    // Predicated region
    $region6: #{net_forward.7} parent=1 // pred_check
      _
    $region7: #{net_forward.7} parent=1 // pred_check_branch
      %18 = sbr.rel (0) target = $region9
    $region8: #{net_forward.7} parent=1 // pred_region
      _
    $region9: #{net_forward.7} parent=1 // pred_fallthru
      _
    // Predicated region
    $region10: #{net_forward.7} parent=1 // pred_check
      _
    $region11: #{net_forward.7} parent=1 // pred_check_branch
      %20 = sbr.rel (0) target = $region13
    $region12: #{net_forward.7} parent=1 // pred_region
      _
    $region13: #{net_forward.7} parent=1 // pred_fallthru
      _
    // Predicated region
    $region14: #{net_forward.7} parent=1 // pred_check
      _
    $region15: #{net_forward.7} parent=1 // pred_check_branch
      %22 = sbr.rel (0) target = $region17
    $region16: #{net_forward.7} parent=1 // pred_region
      _
    $region17: #{net_forward.7} parent=1 // pred_fallthru
      _
    // Predicated region
    $region18: #{net_forward.7} parent=1 // pred_check
      _
    $region19: #{net_forward.7} parent=1 // pred_check_branch
      %24 = sbr.rel (0) target = $region21
    $region20: #{net_forward.7} parent=1 // pred_region
      _
    $region21: #{net_forward.7} parent=1 // pred_fallthru
      _
    // Predicated region
    $region22: #{net_forward.7} parent=1 // pred_check
      _
    $region23: #{net_forward.7} parent=1 // pred_check_branch
      %26 = sbr.rel (0) target = $region25
    $region24: #{net_forward.7} parent=1 // pred_region
      _
    $region25: #{net_forward.7} parent=1 // pred_fallthru
      _
    // Predicated region
    $region26: #{net_forward.7} parent=1 // pred_check
      _
    $region27: #{net_forward.7} parent=1 // pred_check_branch
      %28 = sbr.rel (0) target = $region29
    $region28: #{net_forward.7} parent=1 // pred_region
      _
    $region29: #{net_forward.7} parent=1 // pred_fallthru
      _
    // Predicated region
    $region30: #{net_forward.7} parent=1 // pred_check
      _
    $region31: #{net_forward.7} parent=1 // pred_check_branch
      %30 = sbr.rel (0) target = $region33
    $region32: #{net_forward.7} parent=1 // pred_region
      _
    $region33: #{net_forward.7} parent=1 // pred_fallthru
      _
    // Predicated region
    $region34: #{net_forward.7} parent=1 // pred_check
      _
    $region35: #{net_forward.7} parent=1 // pred_check_branch
      %32 = sbr.rel (0) target = $region37
    $region36: #{net_forward.7} parent=1 // pred_region
      _
    $region37: #{net_forward.7} parent=1 // pred_fallthru
      _
    %v34 = vld [vmem:[%s0] sm:$0xf]
    %v35 = vld [vmem:[%s1] sm:$0xf]
    %v36 = vld [vmem:[%s1 + $0x4] sm:$0xf]
    %v37 = vld [vmem:[%s1 + $0x8] sm:$0xf]
    %v38 = vld [vmem:[%s1 + $0xc] sm:$0xf]
    %v39 = vld [vmem:[%s1 + $0x10] sm:$0xf]
    %v40 = vld [vmem:[%s1 + $0x14] sm:$0xf]
    %v41 = vld [vmem:[%s1 + $0x18] sm:$0xf]
    %v42 = vld [vmem:[%s1 + $0x1c] sm:$0xf]
    %v43 = vld [vmem:[%s2] sm:$0x1]
    %v45 = vlaneseq
    %v46 = vshrl.u32 %v45, 7
    %v47 = vsub.s32 0, %v46
    %v48 = vrot.slane %v43, %v47
    %v58 = vunpack.c.l.b16 %v35
    %v59 = vunpack.c.l.b16 %v36
    %v60 = vunpack.c.l.b16 %v37
    %v61 = vunpack.c.l.b16 %v38
    %v62 = vunpack.c.l.b16 %v39
    %v63 = vunpack.c.l.b16 %v40
    %v64 = vunpack.c.l.b16 %v41
    %v65 = vunpack.c.l.b16 %v42
    %v66 = vpack.c.b16 %v59, %v58
    %v67 = vpack.c.b16 %v61, %v60
    %v68 = vpack.c.b16 %v63, %v62
    %v69 = vpack.c.b16 %v65, %v64
    %vm74 = vcmask 523264
    %v76 = vsel %vm74, %v34, 0
    %78 = vmatprep.subr.bf16.mxu0 0
    %79 = vmatpush1.bf16.msra.mxu0 %v66
    %80 = vmatprep.subr.bf16.mxu0 0
    %81 = vmatpush1.bf16.msra.mxu0 %v67
    %82 = vmatprep.subr.bf16.mxu0 0
    %83 = vmatpush1.bf16.msra.mxu0 %v68
    %84 = vmatprep.subr.bf16.mxu0 0
    %85 = vmatpush1.bf16.msra.mxu0 %v69
    %86 = vmatprep.subr.bf16.mxu0 0
    %87 = vmatpush1.bf16.msra.mxu0 0
    %88 = vmatprep.subr.bf16.mxu0 0
    %89 = vmatpush1.bf16.msra.mxu0 0
    %90 = vmatprep.subr.bf16.mxu0 0
    %91 = vmatpush1.bf16.msra.mxu0 0
    %92 = vmatprep.subr.bf16.mxu0 0
    %93 = vmatpush1.bf16.msra.mxu0 0
    %94 = vmatprep.subr.bf16.mxu0 0
    %95 = vmatpush1.bf16.msra.mxu0 0
    %96 = vmatprep.subr.bf16.mxu0 0
    %97 = vmatpush1.bf16.msra.mxu0 0
    %98 = vmatprep.subr.bf16.mxu0 0
    %99 = vmatpush1.bf16.msra.mxu0 0
    %100 = vmatprep.subr.bf16.mxu0 0
    %101 = vmatpush1.bf16.msra.mxu0 0
    %102 = vmatprep.subr.bf16.mxu0 0
    %103 = vmatpush1.bf16.msra.mxu0 0
    %104 = vmatprep.subr.bf16.mxu0 0
    %105 = vmatpush1.bf16.msra.mxu0 0
    %106 = vmatprep.subr.bf16.mxu0 0
    %107 = vmatpush1.bf16.msra.mxu0 0
    %108 = vmatprep.subr.bf16.mxu0 0
    %109 = vmatpush1.bf16.msra.mxu0 0
    %110 = vmatprep.mubr.bf16.mxu0 0
    %111 = vmatmul.mubr.bf16.gmra.mrb[0].mxu0 %v76
    %v112 = vpop.f32.mrb[0].mxu0
    %v113 = vadd.f32 %v48, %v112
    %v114 = vpop.f32.mrb[0].mxu0
    %v115 = vpop.f32.mrb[0].mxu0
    %v116 = vpop.f32.mrb[0].mxu0
    %117 = vdwg.mxu0
    %v118 = vmax.f32 %v113, 0.0
    %v119 = vld [vmem:[%s7] sm:$0xff]
    %vm120 = vcmp.ge.u32.totalorder %v119, 858993459
    %v121 = vsel %vm120, 1, 0
    %v122 = vcvt.s32.f32 %v121
    %v123 = vmul.f32 %v122, 1.25
    %v124 = vmul.f32 %v118, %v123
    %v125 = vpack.c.bf16 %v124, %v124
    %v126 = vld [vmem:[%s3] sm:$0xf]
    %v127 = vld [vmem:[%s3 + $0x4] sm:$0xf]
    %v128 = vld [vmem:[%s3 + $0x8] sm:$0xf]
    %v129 = vld [vmem:[%s3 + $0xc] sm:$0xf]
    %v130 = vld [vmem:[%s3 + $0x10] sm:$0xf]
    %v131 = vld [vmem:[%s3 + $0x14] sm:$0xf]
    %v132 = vld [vmem:[%s3 + $0x18] sm:$0xf]
    %v133 = vld [vmem:[%s3 + $0x1c] sm:$0xf]
    %v134 = vld [vmem:[%s3 + $0x20] sm:$0xf]
    %v135 = vld [vmem:[%s3 + $0x24] sm:$0xf]
    %v136 = vld [vmem:[%s3 + $0x28] sm:$0xf]
    %v137 = vld [vmem:[%s3 + $0x2c] sm:$0xf]
    %v138 = vld [vmem:[%s3 + $0x30] sm:$0xf]
    %v139 = vld [vmem:[%s3 + $0x34] sm:$0xf]
    %v140 = vld [vmem:[%s3 + $0x38] sm:$0xf]
    %v141 = vld [vmem:[%s3 + $0x3c] sm:$0xf]
    %v142 = vld [vmem:[%s4] sm:$0x1]
    %v144 = vlaneseq
    %v145 = vshrl.u32 %v144, 7
    %v146 = vsub.s32 0, %v145
    %v147 = vrot.slane %v142, %v146
    %v165 = vunpack.c.l.b16 %v126
    %v166 = vunpack.c.l.b16 %v127
    %v167 = vunpack.c.l.b16 %v128
    %v168 = vunpack.c.l.b16 %v129
    %v169 = vunpack.c.l.b16 %v130
    %v170 = vunpack.c.l.b16 %v131
    %v171 = vunpack.c.l.b16 %v132
    %v172 = vunpack.c.l.b16 %v133
    %v173 = vunpack.c.l.b16 %v134
    %v174 = vunpack.c.l.b16 %v135
    %v175 = vunpack.c.l.b16 %v136
    %v176 = vunpack.c.l.b16 %v137
    %v177 = vunpack.c.l.b16 %v138
    %v178 = vunpack.c.l.b16 %v139
    %v179 = vunpack.c.l.b16 %v140
    %v180 = vunpack.c.l.b16 %v141
    %v181 = vpack.c.b16 %v166, %v165
    %v182 = vpack.c.b16 %v168, %v167
    %v183 = vpack.c.b16 %v170, %v169
    %v184 = vpack.c.b16 %v172, %v171
    %v185 = vpack.c.b16 %v174, %v173
    %v186 = vpack.c.b16 %v176, %v175
    %v187 = vpack.c.b16 %v178, %v177
    %v188 = vpack.c.b16 %v180, %v179
    %197 = vmatprep.subr.bf16.mxu0 0
    %198 = vmatpush1.bf16.msra.mxu0 %v181
    %199 = vmatprep.subr.bf16.mxu0 0
    %200 = vmatpush1.bf16.msra.mxu0 %v182
    %201 = vmatprep.subr.bf16.mxu0 0
    %202 = vmatpush1.bf16.msra.mxu0 %v183
    %203 = vmatprep.subr.bf16.mxu0 0
    %204 = vmatpush1.bf16.msra.mxu0 %v184
    %205 = vmatprep.subr.bf16.mxu0 0
    %206 = vmatpush1.bf16.msra.mxu0 %v185
    %207 = vmatprep.subr.bf16.mxu0 0
    %208 = vmatpush1.bf16.msra.mxu0 %v186
    %209 = vmatprep.subr.bf16.mxu0 0
    %210 = vmatpush1.bf16.msra.mxu0 %v187
    %211 = vmatprep.subr.bf16.mxu0 0
    %212 = vmatpush1.bf16.msra.mxu0 %v188
    %213 = vmatprep.subr.bf16.mxu0 0
    %214 = vmatpush1.bf16.msra.mxu0 0
    %215 = vmatprep.subr.bf16.mxu0 0
    %216 = vmatpush1.bf16.msra.mxu0 0
    %217 = vmatprep.subr.bf16.mxu0 0
    %218 = vmatpush1.bf16.msra.mxu0 0
    %219 = vmatprep.subr.bf16.mxu0 0
    %220 = vmatpush1.bf16.msra.mxu0 0
    %221 = vmatprep.subr.bf16.mxu0 0
    %222 = vmatpush1.bf16.msra.mxu0 0
    %223 = vmatprep.subr.bf16.mxu0 0
    %224 = vmatpush1.bf16.msra.mxu0 0
    %225 = vmatprep.subr.bf16.mxu0 0
    %226 = vmatpush1.bf16.msra.mxu0 0
    %227 = vmatprep.subr.bf16.mxu0 0
    %228 = vmatpush1.bf16.msra.mxu0 0
    %229 = vmatprep.mubr.bf16.mxu0 0
    %230 = vmatmul.mubr.bf16.gmra.mrb[0].mxu0 %v125
    %v231 = vpop.f32.mrb[0].mxu0
    %v232 = vadd.f32 %v147, %v231
    %v233 = vpop.f32.mrb[0].mxu0
    %v234 = vpop.f32.mrb[0].mxu0
    %v235 = vpop.f32.mrb[0].mxu0
    %236 = vdwg.mxu0
    %v237 = vmax.f32 %v232, 0.0
    %v238 = vld [vmem:[%s8] sm:$0xff]
    %vm239 = vcmp.ge.u32.totalorder %v238, 2147483648
    %v240 = vsel %vm239, 1, 0
    %v241 = vcvt.s32.f32 %v240
    %v242 = vmul.f32 %v241, 2.0
    %v243 = vmul.f32 %v237, %v242
    %v244 = vpack.c.bf16 %v243, %v243
    %v245 = vld [vmem:[%s5] sm:$0xf]
    %v246 = vld [vmem:[%s5 + $0x4] sm:$0xf]
    %v247 = vld [vmem:[%s5 + $0x8] sm:$0xf]
    %v248 = vld [vmem:[%s5 + $0xc] sm:$0xf]
    %v249 = vld [vmem:[%s5 + $0x10] sm:$0xf]
    %v250 = vld [vmem:[%s5 + $0x14] sm:$0xf]
    %v251 = vld [vmem:[%s5 + $0x18] sm:$0xf]
    %v252 = vld [vmem:[%s5 + $0x1c] sm:$0xf]
    %v253 = vld [vmem:[%s5 + $0x20] sm:$0xf]
    %v254 = vld [vmem:[%s5 + $0x24] sm:$0xf]
    %v255 = vld [vmem:[%s5 + $0x28] sm:$0xf]
    %v256 = vld [vmem:[%s5 + $0x2c] sm:$0xf]
    %v257 = vld [vmem:[%s5 + $0x30] sm:$0xf]
    %v258 = vld [vmem:[%s5 + $0x34] sm:$0xf]
    %v259 = vld [vmem:[%s5 + $0x38] sm:$0xf]
    %v260 = vld [vmem:[%s5 + $0x3c] sm:$0xf]
    %v261 = vld [vmem:[%s6] sm:$0x1]
    %v263 = vlaneseq
    %v264 = vshrl.u32 %v263, 7
    %v265 = vsub.s32 0, %v264
    %v266 = vrot.slane %v261, %v265
    %v284 = vunpack.c.l.b16 %v245
    %v285 = vunpack.c.l.b16 %v246
    %v286 = vunpack.c.l.b16 %v247
    %v287 = vunpack.c.l.b16 %v248
    %v288 = vunpack.c.l.b16 %v249
    %v289 = vunpack.c.l.b16 %v250
    %v290 = vunpack.c.l.b16 %v251
    %v291 = vunpack.c.l.b16 %v252
    %v292 = vunpack.c.l.b16 %v253
    %v293 = vunpack.c.l.b16 %v254
    %v294 = vunpack.c.l.b16 %v255
    %v295 = vunpack.c.l.b16 %v256
    %v296 = vunpack.c.l.b16 %v257
    %v297 = vunpack.c.l.b16 %v258
    %v298 = vunpack.c.l.b16 %v259
    %v299 = vunpack.c.l.b16 %v260
    %v300 = vpack.c.b16 %v285, %v284
    %v301 = vpack.c.b16 %v287, %v286
    %v302 = vpack.c.b16 %v289, %v288
    %v303 = vpack.c.b16 %v291, %v290
    %v304 = vpack.c.b16 %v293, %v292
    %v305 = vpack.c.b16 %v295, %v294
    %v306 = vpack.c.b16 %v297, %v296
    %v307 = vpack.c.b16 %v299, %v298
    %316 = vmatprep.subr.bf16.mxu0 0
    %317 = vmatpush1.bf16.msra.mxu0 %v300
    %318 = vmatprep.subr.bf16.mxu0 0
    %319 = vmatpush1.bf16.msra.mxu0 %v301
    %320 = vmatprep.subr.bf16.mxu0 0
    %321 = vmatpush1.bf16.msra.mxu0 %v302
    %322 = vmatprep.subr.bf16.mxu0 0
    %323 = vmatpush1.bf16.msra.mxu0 %v303
    %324 = vmatprep.subr.bf16.mxu0 0
    %325 = vmatpush1.bf16.msra.mxu0 %v304
    %326 = vmatprep.subr.bf16.mxu0 0
    %327 = vmatpush1.bf16.msra.mxu0 %v305
    %328 = vmatprep.subr.bf16.mxu0 0
    %329 = vmatpush1.bf16.msra.mxu0 %v306
    %330 = vmatprep.subr.bf16.mxu0 0
    %331 = vmatpush1.bf16.msra.mxu0 %v307
    %332 = vmatprep.subr.bf16.mxu0 0
    %333 = vmatpush1.bf16.msra.mxu0 0
    %334 = vmatprep.subr.bf16.mxu0 0
    %335 = vmatpush1.bf16.msra.mxu0 0
    %336 = vmatprep.subr.bf16.mxu0 0
    %337 = vmatpush1.bf16.msra.mxu0 0
    %338 = vmatprep.subr.bf16.mxu0 0
    %339 = vmatpush1.bf16.msra.mxu0 0
    %340 = vmatprep.subr.bf16.mxu0 0
    %341 = vmatpush1.bf16.msra.mxu0 0
    %342 = vmatprep.subr.bf16.mxu0 0
    %343 = vmatpush1.bf16.msra.mxu0 0
    %344 = vmatprep.subr.bf16.mxu0 0
    %345 = vmatpush1.bf16.msra.mxu0 0
    %346 = vmatprep.subr.bf16.mxu0 0
    %347 = vmatpush1.bf16.msra.mxu0 0
    %348 = vmatprep.mubr.bf16.mxu0 0
    %349 = vmatmul.mubr.bf16.gmra.mrb[0].mxu0 %v244
    %v350 = vpop.f32.mrb[0].mxu0
    %v351 = vadd.f32 %v266, %v350
    %v352 = vpop.f32.mrb[0].mxu0
    %v353 = vpop.f32.mrb[0].mxu0
    %v354 = vpop.f32.mrb[0].mxu0
    %355 = vdwg.mxu0
    %356 = vst [vmem:[#allocation2] sm:$0xff] %v351
    // Predicated region
    $region38: #{net_forward.7} parent=1 // pred_check
      _
    $region39: #{net_forward.7} parent=1 // pred_check_branch
      %358 = sbr.rel (0) target = $region41
    $region40: #{net_forward.7} parent=1 // pred_region
      %s360 = ssub.s32 128, 128
      %361 = vsyncadd [#allocation3], %s360
      %s363 = sshll.u32 [#allocation2], 4
      %s364 = int_to_ptr.vmem [resolvable:$true] %s363
      %366 = dma.vmem_to_hbm [thread:$0]  %s364, 128, %s9, [#allocation3]
    $region41: #{net_forward.7} parent=1 // pred_fallthru
      _
    // Predicated region
    $region42: #{net_forward.7} parent=1 // pred_check
      _
    $region43: #{net_forward.7} parent=1 // pred_check_branch
      %368 = sbr.rel (0) target = $region45
    $region44: #{net_forward.7} parent=1 // pred_region
      %369 = dma.done [#allocation3], 128
    $region45: #{net_forward.7} parent=1 // pred_fallthru
      _
    %370 = vsyncpa [#allocation3], 1

</llo_original>
